<compile_context>
chip_gen: v6e
topology: v6e:2x2x1
jax: 0.10.0
libtpu: 0.0.40
codegen_flags: <defaults>
</compile_context>

<pallas_src>
import functools

import jax
import jax.numpy as jnp
from jax.experimental import pallas as pl
from jax.experimental.pallas import tpu as pltpu


def _round_up(x, m):
    return (x + m - 1) // m * m


@functools.lru_cache(maxsize=1)
def _vmem_limit_bytes():
    try:
        cap = int(pltpu.get_tpu_info().vmem_capacity_bytes)
    except Exception:  # conservative fallback if the query is unavailable
        cap = 64 * 1024 * 1024
    # ~3/4 of physical VMEM: ~48 MiB on v7x (64 MiB), ~96 MiB on v5e/v6e.
    return min(cap * 3 // 4, 100 * 1024 * 1024)


# ---------------------------------------------------------------------------
# Fused Pallas kernel:  out = act( BN( A @ B ) )  or  act( A @ B + bias )
# ---------------------------------------------------------------------------
def _mm_fused_kernel(a_ref, b_ref, side_ref, o_ref, *, act, use_bn, eps):
    # Full-K reduction in a single dot -- no accumulator scratch needed.
    y = jnp.dot(a_ref[...], b_ref[...], preferred_element_type=jnp.float32)
    if use_bn:
        # Training-mode BatchNorm: all M (= N*Ho*Wo) rows are resident in this
        # column tile, so per-channel batch stats are exact full-batch stats.
        # side = [gamma; beta]  (conv bias omitted: exact no-op under BN).
        mean = jnp.mean(y, axis=0, keepdims=True)
        var = jnp.mean(jnp.square(y - mean), axis=0, keepdims=True)
        y = (y - mean) * jax.lax.rsqrt(var + eps)
        y = y * side_ref[0:1, :] + side_ref[1:2, :]
    else:
        y = y + side_ref[0:1, :]                  # side = [bias]
    if act == "leaky":
        y = jnp.maximum(y, 0.2 * y)               # LeakyReLU(0.2)
    elif act == "sigmoid":
        y = jax.nn.sigmoid(y)
    o_ref[...] = y.astype(o_ref.dtype)


def matmul_fused(a, b_tiled, side, *, act="none", use_bn=False,
                 out_dtype=jnp.float32, eps=1e-5):
    """a: (M, K) bf16; b_tiled: (N//tn, K, tn) bf16 contiguous weight tiles;
    side: (1, N) bias or (2, N) [gamma; beta], f32.  K, tn multiples of 128.

    Full M stays resident per column tile (required for the fused batch-stat
    BN epilogue); the grid only iterates N tiles.
    """
    M, K = a.shape
    ntiles, kb, tn = b_tiled.shape
    assert K == kb and K % 128 == 0 and tn % 128 == 0
    N = ntiles * tn
    n_side = side.shape[0]
    assert side.shape == (n_side, N)

    kernel = functools.partial(_mm_fused_kernel, act=act, use_bn=use_bn,
                               eps=eps)
    return pl.pallas_call(
        kernel,
        out_shape=jax.ShapeDtypeStruct((M, N), out_dtype),
        grid_spec=pltpu.PrefetchScalarGridSpec(
            num_scalar_prefetch=0,
            grid=(ntiles,),                                   # N tiles only
            in_specs=[
                pl.BlockSpec((M, K), lambda j: (0, 0)),       # A slab, resident
                pl.BlockSpec((None, K, tn), lambda j: (j, 0, 0)),  # contiguous B
                pl.BlockSpec((n_side, tn), lambda j: (0, j)),  # bias / gamma,beta
            ],
            out_specs=pl.BlockSpec((M, tn), lambda j: (0, j)),
        ),
        compiler_params=pltpu.CompilerParams(
            dimension_semantics=("parallel",),
            vmem_limit_bytes=_vmem_limit_bytes(),
        ),
    )(a, b_tiled, side)


# ---------------------------------------------------------------------------
# Conv glue: im2col via one XLA patch-extraction op, bf16, K padded to 128.
# Patch feature ordering is channel-major: index = c*k*k + kh*k + kw.
# ---------------------------------------------------------------------------
def _extract_patches(x_nhwc, k=5, stride=2, pad=2):
    n, h, w, c = x_nhwc.shape
    ho = (h + 2 * pad - k) // stride + 1
    wo = (w + 2 * pad - k) // stride + 1
    patches = jax.lax.conv_general_dilated_patches(
        x_nhwc, filter_shape=(k, k), window_strides=(stride, stride),
        padding=((pad, pad), (pad, pad)),
        dimension_numbers=("NHWC", "HWIO", "NHWC"))
    patches = patches.reshape(n * ho * wo, c * k * k)
    kdim = c * k * k
    k_pad = _round_up(kdim, 128)
    if k_pad != kdim:
        patches = jnp.pad(patches, ((0, 0), (0, k_pad - kdim)))
    return patches.astype(jnp.bfloat16), (n, ho, wo)


# ---------------------------------------------------------------------------
# One-time parameter preparation (reshape / pad / pre-tile / cast bf16)
# ---------------------------------------------------------------------------
def prepare_params(raw, max_tn=512):
    def tile_w(wm):
        # wm: (K, N) f32  ->  (N//tn, K_pad, tn) bf16, each tile contiguous.
        kdim, n = wm.shape
        k_pad = _round_up(kdim, 128)
        if k_pad != kdim:
            wm = jnp.pad(wm, ((0, k_pad - kdim), (0, 0)))
        tn = min(n, max_tn)
        assert n % tn == 0
        wm = wm.reshape(k_pad, n // tn, tn).transpose(1, 0, 2)
        return wm.astype(jnp.bfloat16)

    def conv_w(w_oihw):
        c_out = w_oihw.shape[0]
        # Patch ordering is (cin, kh, kw)-major -> OIHW -> (I, H, W, O).
        wm = jnp.transpose(w_oihw, (1, 2, 3, 0)).reshape(-1, c_out)
        return tile_w(wm)

    def bias_side(b):
        return b.reshape(1, -1).astype(jnp.float32)

    def bn_side(gamma, beta):
        return jnp.stack([gamma, beta], axis=0).astype(jnp.float32)   # (2, N)

    # Final Linear: torch weight (1, K) -> column (K, 1), pad to 128 lanes.
    fc_w = raw["fc_w"]
    fc_col = jnp.pad(fc_w.T, ((0, 0), (0, 127)))                       # (K, 128)
    fc_b = jnp.pad(raw["fc_b"], (0, 127))

    return {
        "w1": conv_w(raw["w1"]), "s1": bias_side(raw["b1"]),
        "w2": conv_w(raw["w2"]), "s2": bn_side(raw["g1"], raw["be1"]),
        "w3": conv_w(raw["w3"]), "s3": bn_side(raw["g2"], raw["be2"]),
        "w4": conv_w(raw["w4"]), "s4": bn_side(raw["g3"], raw["be3"]),
        "fc_w": tile_w(fc_col), "fc_s": bias_side(fc_b),
    }


# ---------------------------------------------------------------------------
# Discriminator forward
# ---------------------------------------------------------------------------
def discriminator_forward(x_nchw, p):
    x = jnp.transpose(x_nchw, (0, 2, 3, 1)).astype(jnp.bfloat16)  # NCHW->NHWC

    # conv1 + LeakyReLU (no BN)
    a, (n, ho, wo) = _extract_patches(x)
    y = matmul_fused(a, p["w1"], p["s1"], act="leaky", use_bn=False,
                     out_dtype=jnp.bfloat16)
    x = y.reshape(n, ho, wo, -1)

    # conv2..conv4: conv + BatchNorm(batch stats) + LeakyReLU, fused epilogue.
    for wk, sk in (("w2", "s2"), ("w3", "s3"), ("w4", "s4")):
        a, (n, ho, wo) = _extract_patches(x)
        y = matmul_fused(a, p[wk], p[sk], act="leaky", use_bn=True,
                         out_dtype=jnp.bfloat16)
        x = y.reshape(n, ho, wo, -1)

    # Match torch's x.view(-1, z*z*1024): flatten in (C, H, W) order.
    x = jnp.transpose(x, (0, 3, 1, 2)).reshape(n, -1)

    # Final Linear + sigmoid; 128 padded output lanes (lane-dense store).
    out = matmul_fused(x, p["fc_w"], p["fc_s"], act="sigmoid", use_bn=False,
                       out_dtype=jnp.float32)
    return out[:, :1]                                             # (N, 1)


# ---------------------------------------------------------------------------
# Deterministic parameter init (shapes per Discriminator.__init__)
# ---------------------------------------------------------------------------
def init_raw_params(key, z_filter_shape=1, in_channels=3):
    ks = jax.random.split(key, 16)
    nrm = lambda k, shape, std, mean=0.0: mean + std * jax.random.normal(
        k, shape, jnp.float32)
    return {
        "w1": nrm(ks[0], (128, in_channels, 5, 5), 0.02),
        "b1": nrm(ks[1], (128,), 0.02),
        "w2": nrm(ks[2], (256, 128, 5, 5), 0.02),
        "b2": nrm(ks[3], (256,), 0.02),
        "w3": nrm(ks[4], (512, 256, 5, 5), 0.02),
        "b3": nrm(ks[5], (512,), 0.02),
        "w4": nrm(ks[6], (1024, 512, 5, 5), 0.02),
        "b4": nrm(ks[7], (1024,), 0.02),
        "g1": nrm(ks[8], (256,), 0.02, mean=1.0),
        "be1": jnp.zeros((256,), jnp.float32),
        "g2": nrm(ks[9], (512,), 0.02, mean=1.0),
        "be2": jnp.zeros((512,), jnp.float32),
        "g3": nrm(ks[10], (1024,), 0.02, mean=1.0),
        "be3": jnp.zeros((1024,), jnp.float32),
        "fc_w": nrm(ks[11], (1, z_filter_shape * z_filter_shape * 1024), 0.02),
        "fc_b": jnp.zeros((1,), jnp.float32),
    }


def _conv1_reference(x_nchw_f32, w_oihw, b):
    """Plain-JAX f32 reference for layer 1 (validates patch/weight ordering)."""
    y = jax.lax.conv_general_dilated(
        x_nchw_f32, w_oihw, window_strides=(2, 2),
        padding=((2, 2), (2, 2)),
        dimension_numbers=("NCHW", "OIHW", "NCHW"))
    y = y + b.reshape(1, -1, 1, 1)
    return jnp.maximum(y, 0.2 * y)


if __name__ == "__main__":
    z_filter_shape = 1
    in_channels = 3
    batch = 2

    key = jax.random.PRNGKey(0)
    k_params, k_x = jax.random.split(key)

    raw = init_raw_params(k_params, z_filter_shape, in_channels)
    params = prepare_params(raw)                         # one-time layout prep

    # Input image: (batch, in_channels, z*16, z*16) = (2, 3, 16, 16), NCHW.
    x = jax.random.normal(
        k_x, (batch, in_channels, z_filter_shape * 16, z_filter_shape * 16),
        dtype=jnp.float32)

    # Layer-1 self-check: fused im2col->GEMM kernel vs XLA conv reference.
    x_nhwc = jnp.transpose(x, (0, 2, 3, 1)).astype(jnp.bfloat16)
    a1, (n1, h1, w1) = _extract_patches(x_nhwc)
    y1 = matmul_fused(a1, params["w1"], params["s1"], act="leaky",
                      use_bn=False, out_dtype=jnp.bfloat16)
    y1_nchw = jnp.transpose(y1.reshape(n1, h1, w1, -1), (0, 3, 1, 2))
    ref1 = _conv1_reference(x, raw["w1"], raw["b1"])
    err = float(jnp.max(jnp.abs(y1_nchw.astype(jnp.float32) - ref1)))
    assert err < 3e-2, f"conv1 mismatch: max abs err {err}"

    # Full forward.
    fwd = jax.jit(discriminator_forward)
    out = jax.block_until_ready(fwd(x, params))

    assert out.shape == (batch, 1), out.shape
    assert bool(jnp.all(jnp.isfinite(out))), "non-finite output"
    assert bool(jnp.all((out >= 0.0) & (out <= 1.0))), "sigmoid range violated"
    print("KERNEL_OK")
</pallas_src>

<mosaic_0001>
module attributes {stable_mosaic.version = 11 : i64} {
  func.func @_mm_fused_kernel(%arg0: i32, %arg1: memref<128x128xbf16, #tpu.memory_space<vmem>>, %arg2: memref<1x128x128xbf16, #tpu.memory_space<vmem>>, %arg3: memref<1x128xf32, #tpu.memory_space<vmem>>, %arg4: memref<128x128xbf16, #tpu.memory_space<vmem>>) attributes {dimension_semantics = [#tpu.dimension_semantics<parallel>], iteration_bounds = array<i64: 1>, scalar_prefetch = 0 : i64, scratch_operands = 0 : i64, tpu.core_type = #tpu.core_type<tc>, window_params = [{pipeline_mode = #tpu.pipeline_mode<synchronous>, transform_indices = @transform_0, window_bounds = array<i64: 128, 128>}, {transform_indices = @transform_1, window_bounds = array<i64: 1, 128, 128>}, {transform_indices = @transform_2, window_bounds = array<i64: 1, 128>}, {transform_indices = @transform_3, window_bounds = array<i64: 128, 128>}]} {
    %c0 = arith.constant 0 : index
    %c0_0 = arith.constant 0 : index
    %0 = vector.load %arg1[%c0, %c0_0] : memref<128x128xbf16, #tpu.memory_space<vmem>>, vector<128x128xbf16>
    %c0_1 = arith.constant 0 : index
    %c0_2 = arith.constant 0 : index
    %c0_3 = arith.constant 0 : index
    %1 = vector.load %arg2[%c0_1, %c0_2, %c0_3] : memref<1x128x128xbf16, #tpu.memory_space<vmem>>, vector<1x128x128xbf16>
    %2 = vector.shape_cast %1 : vector<1x128x128xbf16> to vector<128x128xbf16>
    %cst = arith.constant dense<0.000000e+00> : vector<128x128xf32>
    %3 = tpu.matmul %0, %2, %cst {dimension_numbers = #tpu.dot_dimension_numbers<[1], [0], [0], [1], [0, 0, 1, 1], [], []>} : vector<128x128xbf16>, vector<128x128xbf16>, vector<128x128xf32> -> vector<128x128xf32>
    %c0_4 = arith.constant 0 : index
    %c0_5 = arith.constant 0 : index
    %4 = vector.load %arg3[%c0_4, %c0_5] : memref<1x128xf32, #tpu.memory_space<vmem>>, vector<1x128xf32>
    %5 = vector.broadcast %4 : vector<1x128xf32> to vector<128x128xf32>
    %6 = arith.addf %3, %5 : vector<128x128xf32>
    %cst_6 = arith.constant 2.000000e-01 : f32
    %7 = vector.broadcast %cst_6 : f32 to vector<128x128xf32>
    %8 = arith.mulf %7, %6 : vector<128x128xf32>
    %9 = arith.maximumf %6, %8 : vector<128x128xf32>
    %10 = arith.truncf %9 : vector<128x128xf32> to vector<128x128xbf16>
    %c0_7 = arith.constant 0 : index
    %c0_8 = arith.constant 0 : index
    %11 = vector.load %arg4[%c0_7, %c0_8] : memref<128x128xbf16, #tpu.memory_space<vmem>>, vector<128x128xbf16>
    tpu.vector_store %arg4[%c0_7, %c0_8], %10 {strides = array<i32>} : memref<128x128xbf16, #tpu.memory_space<vmem>>, vector<128x128xbf16>,
    return
  }
  func.func @transform_0(%arg0: i32) -> (i32, i32) {
    %c0_i32 = arith.constant 0 : i32
    %c0_i32_0 = arith.constant 0 : i32
    %c0_i32_1 = arith.constant 0 : i32
    return %c0_i32, %c0_i32_0 : i32, i32
  }
  func.func @transform_1(%arg0: i32) -> (i32, i32, i32) {
    %c0_i32 = arith.constant 0 : i32
    %c0_i32_0 = arith.constant 0 : i32
    %c0_i32_1 = arith.constant 0 : i32
    return %arg0, %c0_i32, %c0_i32_0 : i32, i32, i32
  }
  func.func @transform_2(%arg0: i32) -> (i32, i32) {
    %c0_i32 = arith.constant 0 : i32
    %c0_i32_0 = arith.constant 0 : i32
    return %c0_i32, %arg0 : i32, i32
  }
  func.func @transform_3(%arg0: i32) -> (i32, i32) {
    %c0_i32 = arith.constant 0 : i32
    %c0_i32_0 = arith.constant 0 : i32
    return %c0_i32, %arg0 : i32, i32
  }
}

</mosaic_0001>

<llo_original>
// kernel: tpu_custom_call.1
$region0: #{tpu_custom_call.1}
  #allocation0 [shape = 'u32[]', space=smem, size = 0x4, offset = 0x4, fixed_abs, tag = 'smem constant byte address 0x4 - core index']
  #allocation1 [shape = 'u32[144,128]{1,0:T(1,128)}', space=vmem, size = 0x12000, scoped, tag = 'internal scratch']
  %s0 = inlined_call_operand.hbm [shape: bf16[128,128], index: 0, kind: input, shape index: {}]
  %s1 = inlined_call_operand.hbm [shape: bf16[1,128,128], index: 1, kind: input, shape index: {}]
  %s2 = inlined_call_operand.vmem [shape: f32[1,128], index: 2, kind: input, shape index: {}]
  %s3 = inlined_call_operand.hbm [shape: bf16[128,128], index: 3, kind: output, shape index: {}]
  %s4 = sld [smem:[#allocation0]]
  $region30: #{tpu_custom_call.1} parent=0
    _
  %s6 = ssub.s32 1, %s4
  %s7 = scalar_select 0, %s6, %s4
  $region1: #{tpu_custom_call.1} parent=0
    #allocation2 [shape = 'u8[32768]{0}', space=vmem, size = 0x8000, scoped, tag = 'input window, operand 0, single buffered']
    #allocation3 [shape = 's32[1]{0}', space=sflag, size = 0x4, scoped, tag = 'scoped memory for tpu_custom_call.1']
    #allocation4 [shape = 's32[1]{0}', space=sflag, size = 0x4, scoped, tag = 'scoped memory for tpu_custom_call.1']
    #allocation5 [shape = 'u8[32768]{0}', space=vmem, size = 0x8000, scoped, tag = 'input window, operand 1, single buffered']
    #allocation6 [shape = 's32[1]{0}', space=sflag, size = 0x4, scoped, tag = 'scoped memory for tpu_custom_call.1']
    #allocation7 [shape = 'u8[32768]{0}', space=vmem, size = 0x8000, scoped, tag = 'output window, operand 0, single buffered']
    %8 = vsyncpa [#allocation3], 0
    %9 = vsyncpa [#allocation6], 0
    %10 = vsyncpa [#allocation4], 0
    // Predicated region
    $region2: #{tpu_custom_call.1} parent=1 // pred_check
      _
    $region3: #{tpu_custom_call.1} parent=1 // pred_check_branch
      %12 = sbr.rel (0) target = $region5
    $region4: #{tpu_custom_call.1} parent=1 // pred_region
      %s14 = ssub.s32 1024, 1024
      %15 = vsyncadd [#allocation3], %s14
      %s16 = sshll.u32 [#allocation2], 4
      %s17 = int_to_ptr.vmem [resolvable:$true] %s16
      %22 = dma.hbm_to_vmem [thread:$0]  %s0, 1024, %s17, [#allocation3], 64, 64, 4
    $region5: #{tpu_custom_call.1} parent=1 // pred_fallthru
      _
    // Predicated region
    $region6: #{tpu_custom_call.1} parent=1 // pred_check
      _
    $region7: #{tpu_custom_call.1} parent=1 // pred_check_branch
      %24 = sbr.rel (0) target = $region9
    $region8: #{tpu_custom_call.1} parent=1 // pred_region
      %s26 = ssub.s32 1024, 1024
      %27 = vsyncadd [#allocation6], %s26
      %s28 = sshll.u32 [#allocation5], 4
      %s29 = int_to_ptr.vmem [resolvable:$true] %s28
      %34 = dma.hbm_to_vmem [thread:$0]  %s1, 1024, %s29, [#allocation6], 64, 64, 4
    $region9: #{tpu_custom_call.1} parent=1 // pred_fallthru
      _
    // Predicated region
    $region10: #{tpu_custom_call.1} parent=1 // pred_check
      _
    $region11: #{tpu_custom_call.1} parent=1 // pred_check_branch
      %36 = sbr.rel (0) target = $region13
    $region12: #{tpu_custom_call.1} parent=1 // pred_region
      _
    $region13: #{tpu_custom_call.1} parent=1 // pred_fallthru
      _
    // Predicated region
    $region14: #{tpu_custom_call.1} parent=1 // pred_check
      _
    $region15: #{tpu_custom_call.1} parent=1 // pred_check_branch
      %38 = sbr.rel (0) target = $region17
    $region16: #{tpu_custom_call.1} parent=1 // pred_region
      %39 = dma.done [#allocation3], 1024
    $region17: #{tpu_custom_call.1} parent=1 // pred_fallthru
      _
    // Predicated region
    $region18: #{tpu_custom_call.1} parent=1 // pred_check
      _
    $region19: #{tpu_custom_call.1} parent=1 // pred_check_branch
      %41 = sbr.rel (0) target = $region21
    $region20: #{tpu_custom_call.1} parent=1 // pred_region
      %42 = dma.done [#allocation6], 1024
    $region21: #{tpu_custom_call.1} parent=1 // pred_fallthru
      _
    %v44 = vld [vmem:[#allocation2] sm:$0xf]
    %v45 = vld [vmem:[#allocation2 + $0x4] sm:$0xf]
    %v46 = vld [vmem:[#allocation2 + $0x8] sm:$0xf]
    %v47 = vld [vmem:[#allocation2 + $0xc] sm:$0xf]
    %v48 = vld [vmem:[#allocation2 + $0x10] sm:$0xf]
    %v49 = vld [vmem:[#allocation2 + $0x14] sm:$0xf]
    %v50 = vld [vmem:[#allocation2 + $0x18] sm:$0xf]
    %v51 = vld [vmem:[#allocation2 + $0x1c] sm:$0xf]
    %v52 = vld [vmem:[#allocation2 + $0x20] sm:$0xf]
    %v53 = vld [vmem:[#allocation2 + $0x24] sm:$0xf]
    %v54 = vld [vmem:[#allocation2 + $0x28] sm:$0xf]
    %v55 = vld [vmem:[#allocation2 + $0x2c] sm:$0xf]
    %v56 = vld [vmem:[#allocation2 + $0x30] sm:$0xf]
    %v57 = vld [vmem:[#allocation2 + $0x34] sm:$0xf]
    %v58 = vld [vmem:[#allocation2 + $0x38] sm:$0xf]
    %v59 = vld [vmem:[#allocation2 + $0x3c] sm:$0xf]
    %v60 = vld [vmem:[#allocation5] sm:$0xf]
    %v61 = vld [vmem:[#allocation5 + $0x4] sm:$0xf]
    %v62 = vld [vmem:[#allocation5 + $0x8] sm:$0xf]
    %v63 = vld [vmem:[#allocation5 + $0xc] sm:$0xf]
    %v64 = vld [vmem:[#allocation5 + $0x10] sm:$0xf]
    %v65 = vld [vmem:[#allocation5 + $0x14] sm:$0xf]
    %v66 = vld [vmem:[#allocation5 + $0x18] sm:$0xf]
    %v67 = vld [vmem:[#allocation5 + $0x1c] sm:$0xf]
    %v68 = vld [vmem:[#allocation5 + $0x20] sm:$0xf]
    %v69 = vld [vmem:[#allocation5 + $0x24] sm:$0xf]
    %v70 = vld [vmem:[#allocation5 + $0x28] sm:$0xf]
    %v71 = vld [vmem:[#allocation5 + $0x2c] sm:$0xf]
    %v72 = vld [vmem:[#allocation5 + $0x30] sm:$0xf]
    %v73 = vld [vmem:[#allocation5 + $0x34] sm:$0xf]
    %v74 = vld [vmem:[#allocation5 + $0x38] sm:$0xf]
    %v75 = vld [vmem:[#allocation5 + $0x3c] sm:$0xf]
    %v76 = vld [vmem:[%s2] sm:$0x1]
    %v78 = vlaneseq
    %v79 = vshrl.u32 %v78, 7
    %v80 = vsub.s32 0, %v79
    %v81 = vrot.slane %v76, %v80
    %v99 = vunpack.c.l.b16 %v44
    %v100 = vunpack.c.l.b16 %v45
    %v101 = vunpack.c.l.b16 %v46
    %v102 = vunpack.c.l.b16 %v47
    %v103 = vunpack.c.l.b16 %v48
    %v104 = vunpack.c.l.b16 %v49
    %v105 = vunpack.c.l.b16 %v50
    %v106 = vunpack.c.l.b16 %v51
    %v107 = vunpack.c.l.b16 %v52
    %v108 = vunpack.c.l.b16 %v53
    %v109 = vunpack.c.l.b16 %v54
    %v110 = vunpack.c.l.b16 %v55
    %v111 = vunpack.c.l.b16 %v56
    %v112 = vunpack.c.l.b16 %v57
    %v113 = vunpack.c.l.b16 %v58
    %v114 = vunpack.c.l.b16 %v59
    %v115 = vpack.c.b16 %v100, %v99
    %v116 = vpack.c.b16 %v102, %v101
    %v117 = vpack.c.b16 %v104, %v103
    %v118 = vpack.c.b16 %v106, %v105
    %v119 = vpack.c.b16 %v108, %v107
    %v120 = vpack.c.b16 %v110, %v109
    %v121 = vpack.c.b16 %v112, %v111
    %v122 = vpack.c.b16 %v114, %v113
    %v147 = vunpack.c.l.b16 %v60
    %v148 = vunpack.c.l.b16 %v61
    %v149 = vunpack.c.l.b16 %v62
    %v150 = vunpack.c.l.b16 %v63
    %v151 = vunpack.c.l.b16 %v64
    %v152 = vunpack.c.l.b16 %v65
    %v153 = vunpack.c.l.b16 %v66
    %v154 = vunpack.c.l.b16 %v67
    %v155 = vunpack.c.l.b16 %v68
    %v156 = vunpack.c.l.b16 %v69
    %v157 = vunpack.c.l.b16 %v70
    %v158 = vunpack.c.l.b16 %v71
    %v159 = vunpack.c.l.b16 %v72
    %v160 = vunpack.c.l.b16 %v73
    %v161 = vunpack.c.l.b16 %v74
    %v162 = vunpack.c.l.b16 %v75
    %v163 = vpack.c.b16 %v148, %v147
    %v164 = vpack.c.b16 %v150, %v149
    %v165 = vpack.c.b16 %v152, %v151
    %v166 = vpack.c.b16 %v154, %v153
    %v167 = vpack.c.b16 %v156, %v155
    %v168 = vpack.c.b16 %v158, %v157
    %v169 = vpack.c.b16 %v160, %v159
    %v170 = vpack.c.b16 %v162, %v161
    %179 = vmatprep.subr.bf16.mxu0 0
    %180 = vmatpush1.bf16.msra.mxu0 %v170
    %181 = vmatprep.subr.bf16.mxu0 0
    %182 = vmatpush1.bf16.msra.mxu0 %v169
    %183 = vmatprep.subr.bf16.mxu0 0
    %184 = vmatpush1.bf16.msra.mxu0 %v168
    %185 = vmatprep.subr.bf16.mxu0 0
    %186 = vmatpush1.bf16.msra.mxu0 %v167
    %187 = vmatprep.subr.bf16.mxu0 0
    %188 = vmatpush1.bf16.msra.mxu0 %v166
    %189 = vmatprep.subr.bf16.mxu0 0
    %190 = vmatpush1.bf16.msra.mxu0 %v165
    %191 = vmatprep.subr.bf16.mxu0 0
    %192 = vmatpush1.bf16.msra.mxu0 %v164
    %193 = vmatprep.subr.bf16.mxu0 0
    %194 = vmatpush1.bf16.msra.mxu0 %v163
    %195 = vmatprep.subr.bf16.mxu0 0
    %196 = vmatpush2.bf16.msra.mxu0 0
    %197 = vmatprep.subr.bf16.mxu0 0
    %198 = vmatpush2.bf16.msra.mxu0 0
    %199 = vmatprep.subr.bf16.mxu0 0
    %200 = vmatpush2.bf16.msra.mxu0 0
    %201 = vmatprep.subr.bf16.mxu0 0
    %202 = vmatpush2.bf16.msra.mxu0 0
    %203 = vmatprep.subr.bf16.mxu0 0
    %204 = vmatpush2.bf16.msra.mxu0 0
    %205 = vmatprep.subr.bf16.mxu0 0
    %206 = vmatpush2.bf16.msra.mxu0 0
    %207 = vmatprep.subr.bf16.mxu0 0
    %208 = vmatpush2.bf16.msra.mxu0 0
    %209 = vmatprep.subr.bf16.mxu0 0
    %210 = vmatpush2.bf16.msra.mxu0 0
    %211 = vmatprep.mubr.bf16.mxu0 0
    %212 = vmatmul.mubr.bf16.gmra.mxu0 %v115
    %v213 = vpop.f32.mrf.mxu0
    %v214 = vadd.f32 %v81, %v213
    %v215 = vpop.f32.mrf.mxu0
    %v216 = vpop.f32.mrf.mxu0
    %v217 = vadd.f32 %v81, %v216
    %v218 = vpop.f32.mrf.mxu0
    %219 = vmatprep.mubr.bf16.mxu0 0
    %220 = vmatmul.mubr.bf16.gmra.mxu0 %v116
    %v221 = vpop.f32.mrf.mxu0
    %v222 = vadd.f32 %v81, %v221
    %v223 = vpop.f32.mrf.mxu0
    %v224 = vpop.f32.mrf.mxu0
    %v225 = vadd.f32 %v81, %v224
    %v226 = vpop.f32.mrf.mxu0
    %227 = vmatprep.mubr.bf16.mxu0 0
    %228 = vmatmul.mubr.bf16.gmra.mxu0 %v117
    %v229 = vpop.f32.mrf.mxu0
    %v230 = vadd.f32 %v81, %v229
    %v231 = vpop.f32.mrf.mxu0
    %v232 = vpop.f32.mrf.mxu0
    %v233 = vadd.f32 %v81, %v232
    %v234 = vpop.f32.mrf.mxu0
    %235 = vmatprep.mubr.bf16.mxu0 0
    %236 = vmatmul.mubr.bf16.gmra.mxu0 %v118
    %v237 = vpop.f32.mrf.mxu0
    %v238 = vadd.f32 %v81, %v237
    %v239 = vpop.f32.mrf.mxu0
    %v240 = vpop.f32.mrf.mxu0
    %v241 = vadd.f32 %v81, %v240
    %v242 = vpop.f32.mrf.mxu0
    %243 = vmatprep.mubr.bf16.mxu0 0
    %244 = vmatmul.mubr.bf16.gmra.mxu0 %v119
    %v245 = vpop.f32.mrf.mxu0
    %v246 = vadd.f32 %v81, %v245
    %v247 = vpop.f32.mrf.mxu0
    %v248 = vpop.f32.mrf.mxu0
    %v249 = vadd.f32 %v81, %v248
    %v250 = vpop.f32.mrf.mxu0
    %251 = vmatprep.mubr.bf16.mxu0 0
    %252 = vmatmul.mubr.bf16.gmra.mxu0 %v120
    %v253 = vpop.f32.mrf.mxu0
    %v254 = vadd.f32 %v81, %v253
    %v255 = vpop.f32.mrf.mxu0
    %v256 = vpop.f32.mrf.mxu0
    %v257 = vadd.f32 %v81, %v256
    %v258 = vpop.f32.mrf.mxu0
    %259 = vmatprep.mubr.bf16.mxu0 0
    %260 = vmatmul.mubr.bf16.gmra.mxu0 %v121
    %v261 = vpop.f32.mrf.mxu0
    %v262 = vadd.f32 %v81, %v261
    %v263 = vpop.f32.mrf.mxu0
    %v264 = vpop.f32.mrf.mxu0
    %v265 = vadd.f32 %v81, %v264
    %v266 = vpop.f32.mrf.mxu0
    %267 = vmatprep.mubr.bf16.mxu0 0
    %268 = vmatmul.mubr.bf16.gmra.mxu0 %v122
    %v269 = vpop.f32.mrf.mxu0
    %v270 = vadd.f32 %v81, %v269
    %v271 = vpop.f32.mrf.mxu0
    %v272 = vpop.f32.mrf.mxu0
    %v273 = vadd.f32 %v81, %v272
    %v274 = vpop.f32.mrf.mxu0
    %275 = vdwg.mxu0
    %v276 = vmul.f32 %v214, 0.2
    %v277 = vmul.f32 %v217, 0.2
    %v278 = vmul.f32 %v222, 0.2
    %v279 = vmul.f32 %v225, 0.2
    %v280 = vmul.f32 %v230, 0.2
    %v281 = vmul.f32 %v233, 0.2
    %v282 = vmul.f32 %v238, 0.2
    %v283 = vmul.f32 %v241, 0.2
    %v284 = vmul.f32 %v246, 0.2
    %v285 = vmul.f32 %v249, 0.2
    %v286 = vmul.f32 %v254, 0.2
    %v287 = vmul.f32 %v257, 0.2
    %v288 = vmul.f32 %v262, 0.2
    %v289 = vmul.f32 %v265, 0.2
    %v290 = vmul.f32 %v270, 0.2
    %v291 = vmul.f32 %v273, 0.2
    %v292 = vmax.f32 %v214, %v276
    %v293 = vmax.f32 %v217, %v277
    %v294 = vmax.f32 %v222, %v278
    %v295 = vmax.f32 %v225, %v279
    %v296 = vmax.f32 %v230, %v280
    %v297 = vmax.f32 %v233, %v281
    %v298 = vmax.f32 %v238, %v282
    %v299 = vmax.f32 %v241, %v283
    %v300 = vmax.f32 %v246, %v284
    %v301 = vmax.f32 %v249, %v285
    %v302 = vmax.f32 %v254, %v286
    %v303 = vmax.f32 %v257, %v287
    %v304 = vmax.f32 %v262, %v288
    %v305 = vmax.f32 %v265, %v289
    %v306 = vmax.f32 %v270, %v290
    %v307 = vmax.f32 %v273, %v291
    %v308 = vpack.c.bf16 %v293, %v292
    %v309 = vpack.c.bf16 %v295, %v294
    %v310 = vpack.c.bf16 %v297, %v296
    %v311 = vpack.c.bf16 %v299, %v298
    %v312 = vpack.c.bf16 %v301, %v300
    %v313 = vpack.c.bf16 %v303, %v302
    %v314 = vpack.c.bf16 %v305, %v304
    %v315 = vpack.c.bf16 %v307, %v306
    %v324 = vunpack.c.l.b16 %v308
    %v325 = vunpack.c.h.b16 %v308
    %v326 = vunpack.c.l.b16 %v309
    %v327 = vunpack.c.h.b16 %v309
    %v328 = vunpack.c.l.b16 %v310
    %v329 = vunpack.c.h.b16 %v310
    %v330 = vunpack.c.l.b16 %v311
    %v331 = vunpack.c.h.b16 %v311
    %v332 = vunpack.c.l.b16 %v312
    %v333 = vunpack.c.h.b16 %v312
    %v334 = vunpack.c.l.b16 %v313
    %v335 = vunpack.c.h.b16 %v313
    %v336 = vunpack.c.l.b16 %v314
    %v337 = vunpack.c.h.b16 %v314
    %v338 = vunpack.c.l.b16 %v315
    %v339 = vunpack.c.h.b16 %v315
    %v340 = vpack.c.b16 %v324, %v324
    %v341 = vpack.c.b16 %v325, %v325
    %v342 = vpack.c.b16 %v326, %v326
    %v343 = vpack.c.b16 %v327, %v327
    %v344 = vpack.c.b16 %v328, %v328
    %v345 = vpack.c.b16 %v329, %v329
    %v346 = vpack.c.b16 %v330, %v330
    %v347 = vpack.c.b16 %v331, %v331
    %v348 = vpack.c.b16 %v332, %v332
    %v349 = vpack.c.b16 %v333, %v333
    %v350 = vpack.c.b16 %v334, %v334
    %v351 = vpack.c.b16 %v335, %v335
    %v352 = vpack.c.b16 %v336, %v336
    %v353 = vpack.c.b16 %v337, %v337
    %v354 = vpack.c.b16 %v338, %v338
    %v355 = vpack.c.b16 %v339, %v339
    %372 = vst [vmem:[#allocation7] sm:$0xf] %v340
    %373 = vst [vmem:[#allocation7 + $0x4] sm:$0xf] %v341
    %374 = vst [vmem:[#allocation7 + $0x8] sm:$0xf] %v342
    %375 = vst [vmem:[#allocation7 + $0xc] sm:$0xf] %v343
    %376 = vst [vmem:[#allocation7 + $0x10] sm:$0xf] %v344
    %377 = vst [vmem:[#allocation7 + $0x14] sm:$0xf] %v345
    %378 = vst [vmem:[#allocation7 + $0x18] sm:$0xf] %v346
    %379 = vst [vmem:[#allocation7 + $0x1c] sm:$0xf] %v347
    %380 = vst [vmem:[#allocation7 + $0x20] sm:$0xf] %v348
    %381 = vst [vmem:[#allocation7 + $0x24] sm:$0xf] %v349
    %382 = vst [vmem:[#allocation7 + $0x28] sm:$0xf] %v350
    %383 = vst [vmem:[#allocation7 + $0x2c] sm:$0xf] %v351
    %384 = vst [vmem:[#allocation7 + $0x30] sm:$0xf] %v352
    %385 = vst [vmem:[#allocation7 + $0x34] sm:$0xf] %v353
    %386 = vst [vmem:[#allocation7 + $0x38] sm:$0xf] %v354
    %387 = vst [vmem:[#allocation7 + $0x3c] sm:$0xf] %v355
    // Predicated region
    $region22: #{tpu_custom_call.1} parent=1 // pred_check
      _
    $region23: #{tpu_custom_call.1} parent=1 // pred_check_branch
      %389 = sbr.rel (0) target = $region25
    $region24: #{tpu_custom_call.1} parent=1 // pred_region
      %s391 = ssub.s32 1024, 1024
      %392 = vsyncadd [#allocation4], %s391
      %s393 = sshll.u32 [#allocation7], 4
      %s394 = int_to_ptr.vmem [resolvable:$true] %s393
      %399 = dma.vmem_to_hbm [thread:$0]  %s394, 1024, %s3, [#allocation4], 64, 64, 4
    $region25: #{tpu_custom_call.1} parent=1 // pred_fallthru
      _
    // Predicated region
    $region26: #{tpu_custom_call.1} parent=1 // pred_check
      _
    $region27: #{tpu_custom_call.1} parent=1 // pred_check_branch
      %401 = sbr.rel (0) target = $region29
    $region28: #{tpu_custom_call.1} parent=1 // pred_region
      %402 = dma.done [#allocation4], 1024
    $region29: #{tpu_custom_call.1} parent=1 // pred_fallthru
      _
    %403 = vsyncpa [#allocation3], 1
    %404 = vsyncpa [#allocation6], 1
    %405 = vsyncpa [#allocation4], 1

</llo_original>
